<compile_context>
chip_gen: v7x
topology: tpu7x:2x2x1
jax: 0.10.0
libtpu: 0.0.40
codegen_flags: <defaults>
</compile_context>

<pallas_src>
import math

import jax
import jax.numpy as jnp
from jax import lax
from jax.experimental import pallas as pl
from jax.experimental.pallas import tpu as pltpu


# --------------------------------------------------------------------------
# GCNLayer: relu( A_hat @ (x @ W^T) + b )
# --------------------------------------------------------------------------
def _gcn_kernel(a_ref, x_ref, wt_ref, b_ref, out_ref):
    # a_ref:  (N, N)      normalized dense adjacency (with self loops)
    # x_ref:  (N, Fin)    node features
    # wt_ref: (Fin, Fout) pre-transposed GCNConv weight
    # b_ref:  (1, Fout)   GCNConv bias
    # out_ref:(N, Fout)
    h = jnp.dot(x_ref[...], wt_ref[...],
                preferred_element_type=jnp.float32)            # (N, Fout)
    agg = jnp.dot(a_ref[...], h,
                  preferred_element_type=jnp.float32)          # (N, Fout)
    out_ref[...] = jnp.maximum(agg + b_ref[...], 0.0).astype(out_ref.dtype)


def build_norm_adj(edge_index, num_nodes):
    """One-time setup: edge_index (2, E) -> dense D^-1/2 (A+I) D^-1/2.

    Mirrors torch_geometric's gcn_norm (add self loops, in-degree symmetric
    normalization).  Runs once per graph, outside the per-call path.
    """
    src = jnp.asarray(edge_index[0], jnp.int32)
    dst = jnp.asarray(edge_index[1], jnp.int32)
    loops = jnp.arange(num_nodes, dtype=jnp.int32)
    src = jnp.concatenate([src, loops])
    dst = jnp.concatenate([dst, loops])
    a = jnp.zeros((num_nodes, num_nodes), jnp.float32).at[dst, src].add(1.0)
    deg = a.sum(axis=1)
    dinv = jnp.where(deg > 0, 1.0 / jnp.sqrt(deg), 0.0)
    return dinv[:, None] * a * dinv[None, :]


def prep_gcn_params(w, b):
    """PyTorch GCNConv stores W as (out, in); pre-transpose once."""
    return jnp.asarray(w, jnp.float32).T, jnp.asarray(b, jnp.float32).reshape(1, -1)


def gcn_layer(x, a_norm, wt, b):
    """x: (N, Fin) f32. a_norm: (N, N). wt: (Fin, Fout). b: (1, Fout)."""
    N, Fin = x.shape
    Fout = wt.shape[1]
    assert a_norm.shape == (N, N) and wt.shape == (Fin, Fout) and b.shape == (1, Fout)

    flops = 2 * N * Fin * Fout + 2 * N * N * Fout + 2 * N * Fout
    bytes_accessed = 4 * (N * N + N * Fin + Fin * Fout + Fout + N * Fout)
    cost = pl.CostEstimate(flops=flops, transcendentals=0,
                           bytes_accessed=bytes_accessed)

    return pl.pallas_call(
        _gcn_kernel,
        out_shape=jax.ShapeDtypeStruct((N, Fout), jnp.float32),
        grid_spec=pltpu.PrefetchScalarGridSpec(
            num_scalar_prefetch=0,
            grid=(1,),                       # tiny problem: one grid step
            in_specs=[
                pl.BlockSpec((N, N), lambda i: (0, 0)),
                pl.BlockSpec((N, Fin), lambda i: (0, 0)),
                pl.BlockSpec((Fin, Fout), lambda i: (0, 0)),
                pl.BlockSpec((1, Fout), lambda i: (0, 0)),
            ],
            out_specs=pl.BlockSpec((N, Fout), lambda i: (0, 0)),
        ),
        cost_estimate=cost,
        compiler_params=pltpu.CompilerParams(
            dimension_semantics=("arbitrary",)),
    )(a_norm, jnp.asarray(x, jnp.float32), wt, b)


def _gcn_reference(x, a_norm, w, b):
    return jax.nn.relu(a_norm @ (x @ w.T) + b)


# --------------------------------------------------------------------------
# LatentCorrelationLayer (review feedback applied)
# --------------------------------------------------------------------------
def _latent_corr_kernel(x_ref, wqk_ref, bqk_ref, corr_ref, attn_ref):
    # x_ref:    (Bb, N, E)  f32 (already f32 from the wrapper; no re-cast)
    # wqk_ref:  (E, 2E)     fused, pre-transposed [Wq^T/sqrt(E) | Wk^T]
    # bqk_ref:  (1, 2E)     fused [bq/sqrt(E) | bk]
    # corr_ref: (Bb, N, E)
    # attn_ref: (Bb, N, N)
    x = x_ref[...]
    _, _, e = x.shape

    # Fused Q/K projection: one lane-full (2E = 128) MXU matmul + one bias add.
    qk = lax.dot_general(
        x, wqk_ref[...],
        dimension_numbers=(((2,), (0,)), ((), ())),
        preferred_element_type=jnp.float32) + bqk_ref[...]     # (Bb, N, 2E)
    # Lane split of the 128-wide result at lane 64: a couple of selects at this
    # size (review: re-verify via bundles_to_text if N*E grows).
    q = qk[:, :, :e]
    k = qk[:, :, e:]

    # 1/sqrt(E) is already folded into the Wq/bq halves -> no scale pass here.
    scores = lax.dot_general(
        q, k,
        dimension_numbers=(((2,), (2,)), ((0,), (0,))),
        preferred_element_type=jnp.float32)                    # (Bb, N, N)

    # Numerically-stable softmax over the last axis.  approx=False -> rows sum
    # to exactly 1 (per review correctness note); cost is negligible here.
    m = jnp.max(scores, axis=-1, keepdims=True)
    ex = jnp.exp(scores - m)
    denom = jnp.sum(ex, axis=-1, keepdims=True)
    attn = ex * pl.reciprocal(denom, approx=False)             # (Bb, N, N)

    corr = lax.dot_general(
        attn, x,
        dimension_numbers=(((2,), (1,)), ((0,), (0,))),
        preferred_element_type=jnp.float32)                    # (Bb, N, E)

    corr_ref[...] = corr.astype(corr_ref.dtype)
    attn_ref[...] = attn.astype(attn_ref.dtype)


@jax.jit
def fuse_qk_params(wq, bq, wk, bk):
    """One-time setup: fuse Q/K Linear params and fold in the softmax scale.

    PyTorch nn.Linear stores weights as (out, in) and computes x @ W.T + b.
    The Q half is pre-scaled by 1/sqrt(E) so the kernel never multiplies the
    (B, N, N) scores tensor by the scale (mathematically exact).
    """
    e = wq.shape[1]
    scale = 1.0 / math.sqrt(float(e))
    wqk = jnp.concatenate(
        [jnp.asarray(wq, jnp.float32).T * scale,
         jnp.asarray(wk, jnp.float32).T], axis=1)
    bqk = jnp.concatenate(
        [jnp.asarray(bq, jnp.float32) * scale,
         jnp.asarray(bk, jnp.float32)], axis=0)
    return wqk, bqk.reshape(1, -1)


def latent_correlation_layer(x, wqk, bqk, *, batch_block=None):
    """x: (B, N, E) f32.  wqk: (E, 2E) fused pre-transposed weight.  bqk: (1, 2E).

    batch_block heuristic (per review):
      * default None -> batch_block = B: a single grid step.  Right choice for
        B <~ 8 on every chip generation (per-step overhead ~600 cyc dominates).
      * v7x only, B >= 16: set batch_block = B // 2 (or smaller multiple) so the
        ("parallel",) batch axis shards across the 2 TensorCores.
      * v5e/v6e (1 TC): never shrink batch_block; it is pure per-step overhead.
    """
    B, N, E = x.shape
    assert wqk.shape == (E, 2 * E) and bqk.shape == (1, 2 * E)
    if batch_block is None:
        batch_block = B
    assert B % batch_block == 0
    grid = (B // batch_block,)

    flops = (2 * B * N * E * (2 * E)      # fused QK projection
             + 2 * B * N * N * E          # q . k^T
             + 2 * B * N * N * E          # attn @ x
             + 6 * B * N * N)             # softmax VPU work
    bytes_accessed = 4 * (B * N * E               # x in
                          + E * 2 * E + 2 * E     # fused weight + bias
                          + B * N * E             # corr out
                          + B * N * N)            # attn out
    cost = pl.CostEstimate(flops=flops, transcendentals=B * N * N,
                           bytes_accessed=bytes_accessed)

    out_shapes = (
        jax.ShapeDtypeStruct((B, N, E), jnp.float32),   # correlated_x
        jax.ShapeDtypeStruct((B, N, N), jnp.float32),   # attention_weights
    )

    return pl.pallas_call(
        _latent_corr_kernel,
        out_shape=out_shapes,
        grid_spec=pltpu.PrefetchScalarGridSpec(
            num_scalar_prefetch=0,
            grid=grid,
            in_specs=[
                pl.BlockSpec((batch_block, N, E), lambda b: (b, 0, 0)),  # x
                pl.BlockSpec((E, 2 * E), lambda b: (0, 0)),              # [Wq^T|Wk^T]
                pl.BlockSpec((1, 2 * E), lambda b: (0, 0)),              # [bq|bk]
            ],
            out_specs=[
                pl.BlockSpec((batch_block, N, E), lambda b: (b, 0, 0)),  # corr
                pl.BlockSpec((batch_block, N, N), lambda b: (b, 0, 0)),  # attn
            ],
        ),
        cost_estimate=cost,
        compiler_params=pltpu.CompilerParams(
            dimension_semantics=("parallel",)),
    )(jnp.asarray(x, jnp.float32), wqk, bqk)


def _latent_corr_reference(x, wq, bq, wk, bk):
    q = jnp.einsum("bne,oe->bno", x, wq) + bq
    k = jnp.einsum("bne,oe->bno", x, wk) + bk
    scores = jnp.einsum("bqe,bke->bqk", q, k) / math.sqrt(x.shape[-1])
    attn = jax.nn.softmax(scores, axis=-1)
    corr = jnp.einsum("bqk,bke->bqe", attn, x)
    return corr, attn


if __name__ == "__main__":
    key = jax.random.PRNGKey(0)
    (kgx, kgw, kgb, kx, kwq, kbq, kwk, kbk) = jax.random.split(key, 8)

    # ---------------- GCNLayer (spec module) ----------------
    num_nodes = 8      # turbines
    in_ch, out_ch = 32, 64

    # Bidirectional ring graph as edge_index (2, 16).
    s = jnp.arange(num_nodes, dtype=jnp.int32)
    d = (s + 1) % num_nodes
    edge_index = jnp.stack([jnp.concatenate([s, d]),
                            jnp.concatenate([d, s])], axis=0)

    bound_g = 1.0 / math.sqrt(in_ch)
    w_gcn = jax.random.uniform(kgw, (out_ch, in_ch), jnp.float32, -bound_g, bound_g)
    b_gcn = jax.random.uniform(kgb, (out_ch,), jnp.float32, -bound_g, bound_g)
    x_gcn = jax.random.normal(kgx, (num_nodes, in_ch), jnp.float32)

    a_norm = build_norm_adj(edge_index, num_nodes)            # one-time setup
    wt_gcn, b2_gcn = prep_gcn_params(w_gcn, b_gcn)            # one-time setup

    out_gcn = gcn_layer(x_gcn, a_norm, wt_gcn, b2_gcn)
    jax.block_until_ready(out_gcn)
    out_gcn_ref = _gcn_reference(x_gcn, a_norm, w_gcn, b_gcn)
    assert out_gcn.shape == (num_nodes, out_ch)
    assert jnp.allclose(out_gcn, out_gcn_ref, atol=1e-4, rtol=1e-4)

    # ---------------- LatentCorrelationLayer ----------------
    embed_size = 64
    num_turbines = 8
    batch = 2

    bound = 1.0 / math.sqrt(embed_size)
    wq = jax.random.uniform(kwq, (embed_size, embed_size), jnp.float32, -bound, bound)
    bq = jax.random.uniform(kbq, (embed_size,), jnp.float32, -bound, bound)
    wk = jax.random.uniform(kwk, (embed_size, embed_size), jnp.float32, -bound, bound)
    bk = jax.random.uniform(kbk, (embed_size,), jnp.float32, -bound, bound)
    x_lc = jax.random.normal(kx, (batch, num_turbines, embed_size), jnp.float32)

    wqk, bqk = jax.block_until_ready(fuse_qk_params(wq, bq, wk, bk))  # one-time

    corr, attn = latent_correlation_layer(x_lc, wqk, bqk)
    jax.block_until_ready((corr, attn))
    corr_ref, attn_ref = _latent_corr_reference(x_lc, wq, bq, wk, bk)
    assert corr.shape == (batch, num_turbines, embed_size)
    assert attn.shape == (batch, num_turbines, num_turbines)
    # Exact reciprocal in the kernel -> tight agreement again.
    assert jnp.allclose(corr, corr_ref, atol=5e-4, rtol=5e-4)
    assert jnp.allclose(attn, attn_ref, atol=5e-4, rtol=5e-4)

    print("KERNEL_OK")
</pallas_src>

<mosaic_0001>
module attributes {stable_mosaic.version = 11 : i64} {
  func.func @_gcn_kernel(%arg0: i32, %arg1: memref<8x8xf32, #tpu.memory_space<vmem>>, %arg2: memref<8x32xf32, #tpu.memory_space<vmem>>, %arg3: memref<32x64xf32, #tpu.memory_space<vmem>>, %arg4: memref<1x64xf32, #tpu.memory_space<vmem>>, %arg5: memref<8x64xf32, #tpu.memory_space<vmem>>) attributes {dimension_semantics = [#tpu.dimension_semantics<arbitrary>], iteration_bounds = array<i64: 1>, scalar_prefetch = 0 : i64, scratch_operands = 0 : i64, tpu.core_type = #tpu.core_type<tc>, window_params = [{pipeline_mode = #tpu.pipeline_mode<synchronous>, transform_indices = @transform_0, window_bounds = array<i64: 8, 8>}, {pipeline_mode = #tpu.pipeline_mode<synchronous>, transform_indices = @transform_1, window_bounds = array<i64: 8, 32>}, {pipeline_mode = #tpu.pipeline_mode<synchronous>, transform_indices = @transform_2, window_bounds = array<i64: 32, 64>}, {pipeline_mode = #tpu.pipeline_mode<synchronous>, transform_indices = @transform_3, window_bounds = array<i64: 1, 64>}, {pipeline_mode = #tpu.pipeline_mode<synchronous>, transform_indices = @transform_4, window_bounds = array<i64: 8, 64>}]} {
    %c0 = arith.constant 0 : index
    %c0_0 = arith.constant 0 : index
    %0 = vector.load %arg2[%c0, %c0_0] : memref<8x32xf32, #tpu.memory_space<vmem>>, vector<8x32xf32>
    %c0_1 = arith.constant 0 : index
    %c0_2 = arith.constant 0 : index
    %1 = vector.load %arg3[%c0_1, %c0_2] : memref<32x64xf32, #tpu.memory_space<vmem>>, vector<32x64xf32>
    %cst = arith.constant dense<0.000000e+00> : vector<8x64xf32>
    %2 = tpu.matmul %0, %1, %cst {dimension_numbers = #tpu.dot_dimension_numbers<[1], [0], [0], [1], [0, 0, 1, 1], [], []>} : vector<8x32xf32>, vector<32x64xf32>, vector<8x64xf32> -> vector<8x64xf32>
    %c0_3 = arith.constant 0 : index
    %c0_4 = arith.constant 0 : index
    %3 = vector.load %arg1[%c0_3, %c0_4] : memref<8x8xf32, #tpu.memory_space<vmem>>, vector<8x8xf32>
    %cst_5 = arith.constant dense<0.000000e+00> : vector<8x64xf32>
    %4 = tpu.matmul %3, %2, %cst_5 {dimension_numbers = #tpu.dot_dimension_numbers<[1], [0], [0], [1], [0, 0, 1, 1], [], []>} : vector<8x8xf32>, vector<8x64xf32>, vector<8x64xf32> -> vector<8x64xf32>
    %c0_6 = arith.constant 0 : index
    %c0_7 = arith.constant 0 : index
    %5 = vector.load %arg4[%c0_6, %c0_7] : memref<1x64xf32, #tpu.memory_space<vmem>>, vector<1x64xf32>
    %6 = vector.broadcast %5 : vector<1x64xf32> to vector<8x64xf32>
    %7 = arith.addf %4, %6 : vector<8x64xf32>
    %cst_8 = arith.constant 0.000000e+00 : f32
    %8 = vector.broadcast %cst_8 : f32 to vector<8x64xf32>
    %9 = arith.maximumf %7, %8 : vector<8x64xf32>
    %c0_9 = arith.constant 0 : index
    %c0_10 = arith.constant 0 : index
    %10 = vector.load %arg5[%c0_9, %c0_10] : memref<8x64xf32, #tpu.memory_space<vmem>>, vector<8x64xf32>
    tpu.vector_store %arg5[%c0_9, %c0_10], %9 {strides = array<i32>} : memref<8x64xf32, #tpu.memory_space<vmem>>, vector<8x64xf32>,
    return
  }
  func.func @transform_0(%arg0: i32) -> (i32, i32) {
    %c0_i32 = arith.constant 0 : i32
    %c0_i32_0 = arith.constant 0 : i32
    %c0_i32_1 = arith.constant 0 : i32
    return %c0_i32, %c0_i32_0 : i32, i32
  }
  func.func @transform_1(%arg0: i32) -> (i32, i32) {
    %c0_i32 = arith.constant 0 : i32
    %c0_i32_0 = arith.constant 0 : i32
    %c0_i32_1 = arith.constant 0 : i32
    return %c0_i32, %c0_i32_0 : i32, i32
  }
  func.func @transform_2(%arg0: i32) -> (i32, i32) {
    %c0_i32 = arith.constant 0 : i32
    %c0_i32_0 = arith.constant 0 : i32
    %c0_i32_1 = arith.constant 0 : i32
    return %c0_i32, %c0_i32_0 : i32, i32
  }
  func.func @transform_3(%arg0: i32) -> (i32, i32) {
    %c0_i32 = arith.constant 0 : i32
    %c0_i32_0 = arith.constant 0 : i32
    %c0_i32_1 = arith.constant 0 : i32
    return %c0_i32, %c0_i32_0 : i32, i32
  }
  func.func @transform_4(%arg0: i32) -> (i32, i32) {
    %c0_i32 = arith.constant 0 : i32
    %c0_i32_0 = arith.constant 0 : i32
    %c0_i32_1 = arith.constant 0 : i32
    return %c0_i32, %c0_i32_0 : i32, i32
  }
}

</mosaic_0001>

<llo_original>
// kernel: tpu_custom_call.1
$region0: #{tpu_custom_call.1}
  #allocation0 [shape = 'u32[]', space=smem, size = 0x4, offset = 0x4, fixed_abs, tag = 'smem constant byte address 0x4 - core index']
  #allocation1 [shape = 'u32[144,128]{1,0:T(1,128)}', space=vmem, size = 0x12000, scoped, tag = 'internal scratch']
  %s0 = inlined_call_operand.hbm [shape: f32[8,8], index: 0, kind: input, shape index: {}]
  %s1 = inlined_call_operand.hbm [shape: f32[8,32], index: 1, kind: input, shape index: {}]
  %s2 = inlined_call_operand.hbm [shape: f32[32,64], index: 2, kind: input, shape index: {}]
  %s3 = inlined_call_operand.vmem [shape: f32[1,64], index: 3, kind: input, shape index: {}]
  %s4 = inlined_call_operand.hbm [shape: f32[8,64], index: 4, kind: output, shape index: {}]
  %s5 = sld [smem:[#allocation0]]
  $region38: #{tpu_custom_call.1} parent=0
    _
  %s7 = ssub.s32 1, %s5
  %s8 = scalar_select 0, %s7, %s5
  $region1: #{tpu_custom_call.1} parent=0
    #allocation2 [shape = 'u8[4096]{0}', space=vmem, size = 0x1000, scoped, tag = 'input window, operand 0, single buffered']
    #allocation3 [shape = 's32[1]{0}', space=sflag, size = 0x4, scoped, tag = 'scoped memory for tpu_custom_call.1']
    #allocation4 [shape = 's32[1]{0}', space=sflag, size = 0x4, scoped, tag = 'scoped memory for tpu_custom_call.1']
    #allocation5 [shape = 'u8[4096]{0}', space=vmem, size = 0x1000, scoped, tag = 'input window, operand 1, single buffered']
    #allocation6 [shape = 's32[1]{0}', space=sflag, size = 0x4, scoped, tag = 'scoped memory for tpu_custom_call.1']
    #allocation7 [shape = 'u8[16384]{0}', space=vmem, size = 0x4000, scoped, tag = 'input window, operand 2, single buffered']
    #allocation8 [shape = 'u8[4096]{0}', space=vmem, size = 0x1000, scoped, tag = 'output window, operand 0, single buffered']
    %9 = vsyncpa [#allocation3], 0
    %10 = vsyncpa [#allocation6], 0
    %11 = vsyncpa [#allocation4], 0
    // Predicated region
    $region2: #{tpu_custom_call.1} parent=1 // pred_check
      _
    $region3: #{tpu_custom_call.1} parent=1 // pred_check_branch
      %13 = sbr.rel (0) target = $region5
    $region4: #{tpu_custom_call.1} parent=1 // pred_region
      %s15 = ssub.s32 128, 128
      %16 = vsyncadd [#allocation3], %s15
      %s18 = sshll.u32 [#allocation2], 4
      %s19 = int_to_ptr.vmem [resolvable:$true] %s18
      %21 = dma.hbm_to_vmem [thread:$0]  %s0, 128, %s19, [#allocation3]
    $region5: #{tpu_custom_call.1} parent=1 // pred_fallthru
      _
    // Predicated region
    $region6: #{tpu_custom_call.1} parent=1 // pred_check
      _
    $region7: #{tpu_custom_call.1} parent=1 // pred_check_branch
      %23 = sbr.rel (0) target = $region9
    $region8: #{tpu_custom_call.1} parent=1 // pred_region
      %s25 = ssub.s32 128, 128
      %26 = vsyncadd [#allocation6], %s25
      %s28 = sshll.u32 [#allocation5], 4
      %s29 = int_to_ptr.vmem [resolvable:$true] %s28
      %31 = dma.hbm_to_vmem [thread:$0]  %s1, 128, %s29, [#allocation6]
    $region9: #{tpu_custom_call.1} parent=1 // pred_fallthru
      _
    // Predicated region
    $region10: #{tpu_custom_call.1} parent=1 // pred_check
      _
    $region11: #{tpu_custom_call.1} parent=1 // pred_check_branch
      %33 = sbr.rel (0) target = $region13
    $region12: #{tpu_custom_call.1} parent=1 // pred_region
      %s35 = ssub.s32 512, 512
      %36 = vsyncadd [#allocation6], %s35
      %s37 = sshll.u32 [#allocation7], 4
      %s38 = int_to_ptr.vmem [resolvable:$true] %s37
      %43 = dma.hbm_to_vmem [thread:$0]  %s2, 512, %s38, [#allocation6], 128, 128, 8
    $region13: #{tpu_custom_call.1} parent=1 // pred_fallthru
      _
    // Predicated region
    $region14: #{tpu_custom_call.1} parent=1 // pred_check
      _
    $region15: #{tpu_custom_call.1} parent=1 // pred_check_branch
      %45 = sbr.rel (0) target = $region17
    $region16: #{tpu_custom_call.1} parent=1 // pred_region
      _
    $region17: #{tpu_custom_call.1} parent=1 // pred_fallthru
      _
    // Predicated region
    $region18: #{tpu_custom_call.1} parent=1 // pred_check
      _
    $region19: #{tpu_custom_call.1} parent=1 // pred_check_branch
      %47 = sbr.rel (0) target = $region21
    $region20: #{tpu_custom_call.1} parent=1 // pred_region
      %48 = dma.done [#allocation3], 128
    $region21: #{tpu_custom_call.1} parent=1 // pred_fallthru
      _
    // Predicated region
    $region22: #{tpu_custom_call.1} parent=1 // pred_check
      _
    $region23: #{tpu_custom_call.1} parent=1 // pred_check_branch
      %50 = sbr.rel (0) target = $region25
    $region24: #{tpu_custom_call.1} parent=1 // pred_region
      %51 = dma.done [#allocation6], 128
    $region25: #{tpu_custom_call.1} parent=1 // pred_fallthru
      _
    // Predicated region
    $region26: #{tpu_custom_call.1} parent=1 // pred_check
      _
    $region27: #{tpu_custom_call.1} parent=1 // pred_check_branch
      %53 = sbr.rel (0) target = $region29
    $region28: #{tpu_custom_call.1} parent=1 // pred_region
      %54 = dma.done [#allocation6], 512
    $region29: #{tpu_custom_call.1} parent=1 // pred_fallthru
      _
    %v55 = vld [vmem:[#allocation5] sm:$0xff]
    %v56 = vld [vmem:[#allocation7] sm:$0xff]
    %v57 = vld [vmem:[#allocation7 + $0x8] sm:$0xff]
    %v58 = vld [vmem:[#allocation7 + $0x10] sm:$0xff]
    %v59 = vld [vmem:[#allocation7 + $0x18] sm:$0xff]
    %vm60 = vcmask 261120
    %v62 = vsel %vm60, %v55, 0
    %64 = vmatprep.subr.mxu0 0.0
    %65 = vmatpush1.msra.mxu0 %v56
    %66 = vmatprep.subr.mxu0 0.0
    %67 = vmatpush1.msra.mxu0 %v57
    %68 = vmatprep.subr.mxu0 0.0
    %69 = vmatpush1.msra.mxu0 %v58
    %70 = vmatprep.subr.mxu0 0.0
    %71 = vmatpush1.msra.mxu0 %v59
    %72 = vmatprep.subr.mxu0 0.0
    %73 = vmatpush1.msra.mxu0 0.0
    %74 = vmatprep.subr.mxu0 0.0
    %75 = vmatpush1.msra.mxu0 0.0
    %76 = vmatprep.subr.mxu0 0.0
    %77 = vmatpush1.msra.mxu0 0.0
    %78 = vmatprep.subr.mxu0 0.0
    %79 = vmatpush1.msra.mxu0 0.0
    %80 = vmatprep.subr.mxu0 0.0
    %81 = vmatpush1.msra.mxu0 0.0
    %82 = vmatprep.subr.mxu0 0.0
    %83 = vmatpush1.msra.mxu0 0.0
    %84 = vmatprep.subr.mxu0 0.0
    %85 = vmatpush1.msra.mxu0 0.0
    %86 = vmatprep.subr.mxu0 0.0
    %87 = vmatpush1.msra.mxu0 0.0
    %88 = vmatprep.subr.mxu0 0.0
    %89 = vmatpush1.msra.mxu0 0.0
    %90 = vmatprep.subr.mxu0 0.0
    %91 = vmatpush1.msra.mxu0 0.0
    %92 = vmatprep.subr.mxu0 0.0
    %93 = vmatpush1.msra.mxu0 0.0
    %94 = vmatprep.subr.mxu0 0.0
    %95 = vmatpush1.msra.mxu0 0.0
    %96 = vmatprep.subr.mxu0 0.0
    %97 = vmatpush1.msra.mxu0 0.0
    %98 = vmatprep.subr.mxu0 0.0
    %99 = vmatpush1.msra.mxu0 0.0
    %100 = vmatprep.subr.mxu0 0.0
    %101 = vmatpush1.msra.mxu0 0.0
    %102 = vmatprep.subr.mxu0 0.0
    %103 = vmatpush1.msra.mxu0 0.0
    %104 = vmatprep.subr.mxu0 0.0
    %105 = vmatpush1.msra.mxu0 0.0
    %106 = vmatprep.subr.mxu0 0.0
    %107 = vmatpush1.msra.mxu0 0.0
    %108 = vmatprep.subr.mxu0 0.0
    %109 = vmatpush1.msra.mxu0 0.0
    %110 = vmatprep.subr.mxu0 0.0
    %111 = vmatpush1.msra.mxu0 0.0
    %112 = vmatprep.subr.mxu0 0.0
    %113 = vmatpush1.msra.mxu0 0.0
    %114 = vmatprep.subr.mxu0 0.0
    %115 = vmatpush1.msra.mxu0 0.0
    %116 = vmatprep.subr.mxu0 0.0
    %117 = vmatpush1.msra.mxu0 0.0
    %118 = vmatprep.subr.mxu0 0.0
    %119 = vmatpush1.msra.mxu0 0.0
    %120 = vmatprep.subr.mxu0 0.0
    %121 = vmatpush1.msra.mxu0 0.0
    %122 = vmatprep.subr.mxu0 0.0
    %123 = vmatpush1.msra.mxu0 0.0
    %124 = vmatprep.subr.mxu0 0.0
    %125 = vmatpush1.msra.mxu0 0.0
    %126 = vmatprep.subr.mxu0 0.0
    %127 = vmatpush1.msra.mxu0 0.0
    %128 = vmatprep.mubr.f32.mxu0 0.0
    %129 = vmatmul.mubr.f32.gmra.mrb[0].mxu0 %v62
    %v130 = vpop.f32.mrb[0].mxu0
    %v131 = vadd.f32 0.0, %v130
    %v132 = vpop.f32.mrb[0].mxu0
    %133 = vdwg.mxu0
    %v134 = vld [vmem:[#allocation2] sm:$0xff]
    %v135 = vld [vmem:[%s3] sm:$0x1]
    %v137 = vlaneseq
    %v138 = vshrl.u32 %v137, 7
    %v139 = vsub.s32 0, %v138
    %v140 = vrot.slane %v135, %v139
    %vm142 = vcmask 64512
    %v144 = vsel %vm142, %v134, 0
    %146 = vmatprep.subr.mxu0 0.0
    %147 = vmatpush1.msra.mxu0 %v131
    %148 = vmatprep.subr.mxu0 0.0
    %149 = vmatpush1.msra.mxu0 0.0
    %150 = vmatprep.subr.mxu0 0.0
    %151 = vmatpush1.msra.mxu0 0.0
    %152 = vmatprep.subr.mxu0 0.0
    %153 = vmatpush1.msra.mxu0 0.0
    %154 = vmatprep.subr.mxu0 0.0
    %155 = vmatpush1.msra.mxu0 0.0
    %156 = vmatprep.subr.mxu0 0.0
    %157 = vmatpush1.msra.mxu0 0.0
    %158 = vmatprep.subr.mxu0 0.0
    %159 = vmatpush1.msra.mxu0 0.0
    %160 = vmatprep.subr.mxu0 0.0
    %161 = vmatpush1.msra.mxu0 0.0
    %162 = vmatprep.subr.mxu0 0.0
    %163 = vmatpush1.msra.mxu0 0.0
    %164 = vmatprep.subr.mxu0 0.0
    %165 = vmatpush1.msra.mxu0 0.0
    %166 = vmatprep.subr.mxu0 0.0
    %167 = vmatpush1.msra.mxu0 0.0
    %168 = vmatprep.subr.mxu0 0.0
    %169 = vmatpush1.msra.mxu0 0.0
    %170 = vmatprep.subr.mxu0 0.0
    %171 = vmatpush1.msra.mxu0 0.0
    %172 = vmatprep.subr.mxu0 0.0
    %173 = vmatpush1.msra.mxu0 0.0
    %174 = vmatprep.subr.mxu0 0.0
    %175 = vmatpush1.msra.mxu0 0.0
    %176 = vmatprep.subr.mxu0 0.0
    %177 = vmatpush1.msra.mxu0 0.0
    %178 = vmatprep.subr.mxu0 0.0
    %179 = vmatpush1.msra.mxu0 0.0
    %180 = vmatprep.subr.mxu0 0.0
    %181 = vmatpush1.msra.mxu0 0.0
    %182 = vmatprep.subr.mxu0 0.0
    %183 = vmatpush1.msra.mxu0 0.0
    %184 = vmatprep.subr.mxu0 0.0
    %185 = vmatpush1.msra.mxu0 0.0
    %186 = vmatprep.subr.mxu0 0.0
    %187 = vmatpush1.msra.mxu0 0.0
    %188 = vmatprep.subr.mxu0 0.0
    %189 = vmatpush1.msra.mxu0 0.0
    %190 = vmatprep.subr.mxu0 0.0
    %191 = vmatpush1.msra.mxu0 0.0
    %192 = vmatprep.subr.mxu0 0.0
    %193 = vmatpush1.msra.mxu0 0.0
    %194 = vmatprep.subr.mxu0 0.0
    %195 = vmatpush1.msra.mxu0 0.0
    %196 = vmatprep.subr.mxu0 0.0
    %197 = vmatpush1.msra.mxu0 0.0
    %198 = vmatprep.subr.mxu0 0.0
    %199 = vmatpush1.msra.mxu0 0.0
    %200 = vmatprep.subr.mxu0 0.0
    %201 = vmatpush1.msra.mxu0 0.0
    %202 = vmatprep.subr.mxu0 0.0
    %203 = vmatpush1.msra.mxu0 0.0
    %204 = vmatprep.subr.mxu0 0.0
    %205 = vmatpush1.msra.mxu0 0.0
    %206 = vmatprep.subr.mxu0 0.0
    %207 = vmatpush1.msra.mxu0 0.0
    %208 = vmatprep.subr.mxu0 0.0
    %209 = vmatpush1.msra.mxu0 0.0
    %210 = vmatprep.mubr.f32.mxu0 0.0
    %211 = vmatmul.mubr.f32.gmra.mrb[0].mxu0 %v144
    %v212 = vpop.f32.mrb[0].mxu0
    %v213 = vadd.f32 %v140, %v212
    %v214 = vpop.f32.mrb[0].mxu0
    %215 = vdwg.mxu0
    %v216 = vmax.f32 %v213, 0.0
    %vm217 = vcmask 523264
    %218 = vst.msk [vmem:[#allocation8] sm:$0xff] %vm217, %v216
    // Predicated region
    $region30: #{tpu_custom_call.1} parent=1 // pred_check
      _
    $region31: #{tpu_custom_call.1} parent=1 // pred_check_branch
      %220 = sbr.rel (0) target = $region33
    $region32: #{tpu_custom_call.1} parent=1 // pred_region
      %s222 = ssub.s32 128, 128
      %223 = vsyncadd [#allocation4], %s222
      %s225 = sshll.u32 [#allocation8], 4
      %s226 = int_to_ptr.vmem [resolvable:$true] %s225
      %228 = dma.vmem_to_hbm [thread:$0]  %s226, 128, %s4, [#allocation4]
    $region33: #{tpu_custom_call.1} parent=1 // pred_fallthru
      _
    // Predicated region
    $region34: #{tpu_custom_call.1} parent=1 // pred_check
      _
    $region35: #{tpu_custom_call.1} parent=1 // pred_check_branch
      %230 = sbr.rel (0) target = $region37
    $region36: #{tpu_custom_call.1} parent=1 // pred_region
      %231 = dma.done [#allocation4], 128
    $region37: #{tpu_custom_call.1} parent=1 // pred_fallthru
      _
    %232 = vsyncpa [#allocation3], 1
    %233 = vsyncpa [#allocation6], 1
    %234 = vsyncpa [#allocation4], 1

</llo_original>
